<compile_context>
chip_gen: v6e
topology: v6e:2x2x1
jax: 0.10.0
libtpu: 0.0.40
codegen_flags: <defaults>
</compile_context>

<pallas_src>
import functools

import jax
import jax.numpy as jnp
from jax.experimental import pallas as pl
from jax.experimental.pallas import tpu as pltpu

INPUT_SIZE = 10
HIDDEN_SIZE = 20
OUTPUT_SIZE = 5
FUSED = HIDDEN_SIZE + OUTPUT_SIZE        # 25 columns of the fused matmul output
SUBLANE = 8
T_BLK_MAX = 64                           # timesteps folded into one grid step


def rnn_seq_kernel(x_ref, h0_ref, wx_ref, wh_ref, b_ref, out_ref, h_scratch,
                   *, t_blk):
    """One grid iteration = one chunk of `t_blk` timesteps, unrolled in-kernel."""
    chunk = pl.program_id(0)

    @pl.when(chunk == 0)
    def _():
        h_scratch[...] = h0_ref[...]

    bp = out_ref.shape[1]

    # ---- loop-invariant hoists (computed once per chunk, not per step) ----
    wx = wx_ref[...]                                        # (I, FUSED)
    wh = wh_ref[...]                                        # (H, FUSED)
    bias = jnp.broadcast_to(b_ref[...], (bp, FUSED))
    col = jax.lax.broadcasted_iota(jnp.int32, (bp, FUSED), 1)
    is_logit = col >= HIDDEN_SIZE
    neg_fill = jnp.full((bp, FUSED), -1e30, jnp.float32)

    def step(t, h):
        # Fused matmul: z[:, :H] == i2h(combined), z[:, H:] == i2o(combined).
        z = (jnp.dot(x_ref[t], wx, preferred_element_type=jnp.float32)
             + jnp.dot(h, wh, preferred_element_type=jnp.float32)
             + bias)
        # Masked log-softmax over the OUTPUT columns only.
        masked = jnp.where(is_logit, z, neg_fill)
        m = jnp.max(masked, axis=1, keepdims=True)
        shifted = masked - m
        lse = jnp.log(jnp.sum(jnp.exp(shifted), axis=1, keepdims=True))
        out_ref[t] = jnp.where(is_logit, shifted - lse, z)
        # Next hidden state: static lane slice (no zero-padded Wh rows needed).
        return z[:, :HIDDEN_SIZE]

    h_final = jax.lax.fori_loop(0, t_blk, step, h_scratch[...], unroll=True)
    h_scratch[...] = h_final            # carry hidden state to the next chunk


def fuse_params(w_i2h, b_i2h, w_i2o, b_i2o):
    """Fuse the two Linear layers (stored pre-transposed [in, out]) once."""
    w_cat = jnp.concatenate([w_i2h, w_i2o], axis=1)            # (30, 25)
    wx = w_cat[:INPUT_SIZE]                                    # (10, 25)
    wh = w_cat[INPUT_SIZE:]                                    # (20, 25)
    b = jnp.concatenate([b_i2h, b_i2o]).reshape(1, FUSED)      # (1, 25)
    return wx, wh, b


def _pad_dim(a, axis, mult):
    pad = (-a.shape[axis]) % mult
    if pad == 0:
        return a
    widths = [(0, 0)] * a.ndim
    widths[axis] = (0, pad)
    return jnp.pad(a, widths)


def _rnn_sequence_impl(x_seq, h0, wx, wh, b):
    """Whole recurrence over (T, B, INPUT_SIZE) in ONE pallas_call.
    Returns (per-step log-softmax (T, B, OUTPUT_SIZE), final hidden (B, HIDDEN_SIZE))."""
    T, B, _ = x_seq.shape
    t_blk = T if T <= T_BLK_MAX else T_BLK_MAX

    xp = _pad_dim(x_seq.astype(jnp.float32), 1, SUBLANE)       # (T, Bp, I)
    xp = _pad_dim(xp, 0, t_blk)                                # (Tp, Bp, I)
    Tp, Bp, _ = xp.shape
    h0p = _pad_dim(h0.astype(jnp.float32), 0, SUBLANE)         # (Bp, H)
    n_chunks = Tp // t_blk

    kernel = functools.partial(rnn_seq_kernel, t_blk=t_blk)
    grid_spec = pltpu.PrefetchScalarGridSpec(
        num_scalar_prefetch=0,
        grid=(n_chunks,),
        in_specs=[
            pl.BlockSpec((t_blk, Bp, INPUT_SIZE), lambda c: (c, 0, 0)),   # x chunk
            pl.BlockSpec((Bp, HIDDEN_SIZE), lambda c: (0, 0)),            # h0 (resident)
            pl.BlockSpec((INPUT_SIZE, FUSED), lambda c: (0, 0)),          # Wx (resident)
            pl.BlockSpec((HIDDEN_SIZE, FUSED), lambda c: (0, 0)),         # Wh (resident)
            pl.BlockSpec((1, FUSED), lambda c: (0, 0)),                   # b  (resident)
        ],
        out_specs=pl.BlockSpec((t_blk, Bp, FUSED), lambda c: (c, 0, 0)),
        scratch_shapes=[pltpu.VMEM((Bp, HIDDEN_SIZE), jnp.float32)],
    )
    slab = pl.pallas_call(
        kernel,
        out_shape=jax.ShapeDtypeStruct((Tp, Bp, FUSED), jnp.float32),
        grid_spec=grid_spec,
        compiler_params=pltpu.CompilerParams(
            dimension_semantics=("arbitrary",),    # recurrence => sequential chunks
            vmem_limit_bytes=32 * 1024 * 1024),
    )(xp, h0p, wx, wh, b)

    outputs = slab[:T, :B, HIDDEN_SIZE:]
    final_hidden = slab[T - 1, :B, :HIDDEN_SIZE]
    return outputs, final_hidden


rnn_sequence_forward = jax.jit(_rnn_sequence_impl)


@jax.jit
def rnn_forward(x, h, wx, wh, b):
    """One RNN cell step (== the PyTorch module's forward), routed through the
    sequence kernel with T=1 so there is a single, dispatch-light code path."""
    out_seq, h_new = _rnn_sequence_impl(x[None], h, wx, wh, b)
    return out_seq[0], h_new


def init_params(key):
    """Deterministic init mimicking nn.Linear's uniform(-1/sqrt(fan_in), ...)."""
    fan_in = INPUT_SIZE + HIDDEN_SIZE
    bound = 1.0 / jnp.sqrt(jnp.float32(fan_in))
    k1, k2, k3, k4 = jax.random.split(key, 4)
    # stored pre-transposed: [in_features, out_features]
    w_i2h = jax.random.uniform(k1, (fan_in, HIDDEN_SIZE), jnp.float32, -bound, bound)
    b_i2h = jax.random.uniform(k2, (HIDDEN_SIZE,), jnp.float32, -bound, bound)
    w_i2o = jax.random.uniform(k3, (fan_in, OUTPUT_SIZE), jnp.float32, -bound, bound)
    b_i2o = jax.random.uniform(k4, (OUTPUT_SIZE,), jnp.float32, -bound, bound)
    return w_i2h, b_i2h, w_i2o, b_i2o


if __name__ == "__main__":
    key = jax.random.PRNGKey(0)
    k_params, k_x, k_h, k_seq = jax.random.split(key, 4)

    batch, seq_len = 2, 8
    x = jax.random.normal(k_x, (batch, INPUT_SIZE), jnp.float32)
    h = jax.random.normal(k_h, (batch, HIDDEN_SIZE), jnp.float32)
    x_seq = jax.random.normal(k_seq, (seq_len, batch, INPUT_SIZE), jnp.float32)

    w_i2h, b_i2h, w_i2o, b_i2o = init_params(k_params)
    wx, wh, b = fuse_params(w_i2h, b_i2h, w_i2o, b_i2o)

    # Plain-JAX reference cell (mirrors the PyTorch forward exactly).
    def ref_cell(x_in, h_in):
        combined = jnp.concatenate([x_in, h_in], axis=1)
        hid = combined @ w_i2h + b_i2h
        logits = combined @ w_i2o + b_i2o
        out = logits - jax.scipy.special.logsumexp(logits, axis=1, keepdims=True)
        return out, hid

    # --- single cell step (== the module's forward) ---
    output, hidden_new = rnn_forward(x, h, wx, wh, b)
    jax.block_until_ready((output, hidden_new))
    ref_out, ref_hid = ref_cell(x, h)
    assert jnp.allclose(hidden_new, ref_hid, atol=1e-4), "cell hidden mismatch"
    assert jnp.allclose(output, ref_out, atol=1e-4), "cell output mismatch"

    # --- full recurrence fused into one pallas_call / one grid step ---
    seq_out, seq_hid = rnn_sequence_forward(x_seq, h, wx, wh, b)
    jax.block_until_ready((seq_out, seq_hid))
    ref_h = h
    for t in range(seq_len):
        ref_o_t, ref_h = ref_cell(x_seq[t], ref_h)
        assert jnp.allclose(seq_out[t], ref_o_t, atol=1e-4), f"seq output mismatch @t={t}"
    assert jnp.allclose(seq_hid, ref_h, atol=1e-4), "seq hidden mismatch"

    print("KERNEL_OK")
</pallas_src>

<mosaic_0001>
module attributes {stable_mosaic.version = 11 : i64} {
  func.func @rnn_seq_kernel(%arg0: i32, %arg1: memref<1x8x10xf32, #tpu.memory_space<vmem>>, %arg2: memref<8x20xf32, #tpu.memory_space<vmem>>, %arg3: memref<10x25xf32, #tpu.memory_space<vmem>>, %arg4: memref<20x25xf32, #tpu.memory_space<vmem>>, %arg5: memref<1x25xf32, #tpu.memory_space<vmem>>, %arg6: memref<1x8x25xf32, #tpu.memory_space<vmem>>, %arg7: memref<8x20xf32, #tpu.memory_space<vmem>>) attributes {dimension_semantics = [#tpu.dimension_semantics<arbitrary>], iteration_bounds = array<i64: 1>, scalar_prefetch = 0 : i64, scratch_operands = 1 : i64, tpu.core_type = #tpu.core_type<tc>, window_params = [{transform_indices = @transform_0, window_bounds = array<i64: 1, 8, 10>}, {pipeline_mode = #tpu.pipeline_mode<synchronous>, transform_indices = @transform_1, window_bounds = array<i64: 8, 20>}, {pipeline_mode = #tpu.pipeline_mode<synchronous>, transform_indices = @transform_2, window_bounds = array<i64: 10, 25>}, {pipeline_mode = #tpu.pipeline_mode<synchronous>, transform_indices = @transform_3, window_bounds = array<i64: 20, 25>}, {pipeline_mode = #tpu.pipeline_mode<synchronous>, transform_indices = @transform_4, window_bounds = array<i64: 1, 25>}, {transform_indices = @transform_5, window_bounds = array<i64: 1, 8, 25>}]} {
    %c0_i32 = arith.constant 0 : i32
    %0 = arith.cmpi eq, %arg0, %c0_i32 : i32
    %1 = arith.extui %0 : i1 to i32
    %c0_i32_0 = arith.constant 0 : i32
    %2 = arith.cmpi ne, %1, %c0_i32_0 : i32
    scf.if %2 {
      %c0_19 = arith.constant 0 : index
      %c0_20 = arith.constant 0 : index
      %38 = vector.load %arg2[%c0_19, %c0_20] : memref<8x20xf32, #tpu.memory_space<vmem>>, vector<8x20xf32>
      %c0_21 = arith.constant 0 : index
      %c0_22 = arith.constant 0 : index
      %39 = vector.load %arg7[%c0_21, %c0_22] : memref<8x20xf32, #tpu.memory_space<vmem>>, vector<8x20xf32>
      tpu.vector_store %arg7[%c0_21, %c0_22], %38 {strides = array<i32>} : memref<8x20xf32, #tpu.memory_space<vmem>>, vector<8x20xf32>,
    } else {
    }
    %c0 = arith.constant 0 : index
    %c0_1 = arith.constant 0 : index
    %3 = vector.load %arg3[%c0, %c0_1] : memref<10x25xf32, #tpu.memory_space<vmem>>, vector<10x25xf32>
    %c0_2 = arith.constant 0 : index
    %c0_3 = arith.constant 0 : index
    %4 = vector.load %arg4[%c0_2, %c0_3] : memref<20x25xf32, #tpu.memory_space<vmem>>, vector<20x25xf32>
    %c0_4 = arith.constant 0 : index
    %c0_5 = arith.constant 0 : index
    %5 = vector.load %arg5[%c0_4, %c0_5] : memref<1x25xf32, #tpu.memory_space<vmem>>, vector<1x25xf32>
    %6 = vector.shape_cast %5 : vector<1x25xf32> to vector<1x25xf32>
    %7 = vector.broadcast %6 : vector<1x25xf32> to vector<8x25xf32>
    %8 = tpu.iota {dimensions = array<i32: 1>} : vector<8x25xi32>
    %c20_i32 = arith.constant 20 : i32
    %9 = vector.broadcast %c20_i32 : i32 to vector<8x25xi32>
    %10 = arith.cmpi sge, %8, %9 : vector<8x25xi32>
    %cst = arith.constant -1.000000e+30 : f32
    %11 = vector.broadcast %cst : f32 to vector<8x25xf32>
    %c0_6 = arith.constant 0 : index
    %c0_7 = arith.constant 0 : index
    %12 = vector.load %arg7[%c0_6, %c0_7] : memref<8x20xf32, #tpu.memory_space<vmem>>, vector<8x20xf32>
    %c0_i32_8 = arith.constant 0 : i32
    %13 = arith.index_cast %c0_i32_8 : i32 to index
    %c0_9 = arith.constant 0 : index
    %c0_10 = arith.constant 0 : index
    %14 = vector.load %arg1[%13, %c0_9, %c0_10] : memref<1x8x10xf32, #tpu.memory_space<vmem>>, vector<1x8x10xf32>
    %15 = vector.shape_cast %14 : vector<1x8x10xf32> to vector<8x10xf32>
    %cst_11 = arith.constant dense<0.000000e+00> : vector<8x25xf32>
    %16 = tpu.matmul %15, %3, %cst_11 {dimension_numbers = #tpu.dot_dimension_numbers<[1], [0], [0], [1], [0, 0, 1, 1], [], []>} : vector<8x10xf32>, vector<10x25xf32>, vector<8x25xf32> -> vector<8x25xf32>
    %cst_12 = arith.constant dense<0.000000e+00> : vector<8x25xf32>
    %17 = tpu.matmul %12, %4, %cst_12 {dimension_numbers = #tpu.dot_dimension_numbers<[1], [0], [0], [1], [0, 0, 1, 1], [], []>} : vector<8x20xf32>, vector<20x25xf32>, vector<8x25xf32> -> vector<8x25xf32>
    %18 = arith.addf %16, %17 : vector<8x25xf32>
    %19 = arith.addf %18, %7 : vector<8x25xf32>
    %20 = arith.select %10, %19, %11 : vector<8x25xi1>, vector<8x25xf32>
    %cst_13 = arith.constant dense<0xFF800000> : vector<8xf32>
    %21 = vector.multi_reduction <maximumf>, %20, %cst_13 [1] : vector<8x25xf32> to vector<8xf32>
    %22 = vector.shape_cast %21 : vector<8xf32> to vector<8x1xf32>
    %23 = vector.broadcast %22 : vector<8x1xf32> to vector<8x25xf32>
    %24 = arith.subf %20, %23 : vector<8x25xf32>
    %25 = math.exp %24 : vector<8x25xf32>
    %cst_14 = arith.constant dense<0.000000e+00> : vector<8xf32>
    %26 = vector.multi_reduction <add>, %25, %cst_14 [1] : vector<8x25xf32> to vector<8xf32>
    %27 = vector.shape_cast %26 : vector<8xf32> to vector<8x1xf32>
    %28 = math.log %27 : vector<8x1xf32>
    %29 = vector.broadcast %28 : vector<8x1xf32> to vector<8x25xf32>
    %30 = arith.subf %24, %29 : vector<8x25xf32>
    %31 = arith.select %10, %30, %19 : vector<8x25xi1>, vector<8x25xf32>
    %32 = arith.index_cast %c0_i32_8 : i32 to index
    %c0_15 = arith.constant 0 : index
    %c0_16 = arith.constant 0 : index
    %33 = vector.load %arg6[%32, %c0_15, %c0_16] : memref<1x8x25xf32, #tpu.memory_space<vmem>>, vector<1x8x25xf32>
    %34 = vector.shape_cast %33 : vector<1x8x25xf32> to vector<8x25xf32>
    %35 = vector.shape_cast %31 : vector<8x25xf32> to vector<1x8x25xf32>
    tpu.vector_store %arg6[%32, %c0_15, %c0_16], %35 {strides = array<i32>} : memref<1x8x25xf32, #tpu.memory_space<vmem>>, vector<1x8x25xf32>,
    %36 = vector.extract_strided_slice %19 {offsets = [0, 0], sizes = [8, 20], strides = [1, 1]} : vector<8x25xf32> to vector<8x20xf32>
    %c1_i32 = arith.constant 1 : i32
    %c0_17 = arith.constant 0 : index
    %c0_18 = arith.constant 0 : index
    %37 = vector.load %arg7[%c0_17, %c0_18] : memref<8x20xf32, #tpu.memory_space<vmem>>, vector<8x20xf32>
    tpu.vector_store %arg7[%c0_17, %c0_18], %36 {strides = array<i32>} : memref<8x20xf32, #tpu.memory_space<vmem>>, vector<8x20xf32>,
    return
  }
  func.func @transform_0(%arg0: i32) -> (i32, i32, i32) {
    %c0_i32 = arith.constant 0 : i32
    %c0_i32_0 = arith.constant 0 : i32
    %c0_i32_1 = arith.constant 0 : i32
    return %arg0, %c0_i32, %c0_i32_0 : i32, i32, i32
  }
  func.func @transform_1(%arg0: i32) -> (i32, i32) {
    %c0_i32 = arith.constant 0 : i32
    %c0_i32_0 = arith.constant 0 : i32
    %c0_i32_1 = arith.constant 0 : i32
    return %c0_i32, %c0_i32_0 : i32, i32
  }
  func.func @transform_2(%arg0: i32) -> (i32, i32) {
    %c0_i32 = arith.constant 0 : i32
    %c0_i32_0 = arith.constant 0 : i32
    %c0_i32_1 = arith.constant 0 : i32
    return %c0_i32, %c0_i32_0 : i32, i32
  }
  func.func @transform_3(%arg0: i32) -> (i32, i32) {
    %c0_i32 = arith.constant 0 : i32
    %c0_i32_0 = arith.constant 0 : i32
    %c0_i32_1 = arith.constant 0 : i32
    return %c0_i32, %c0_i32_0 : i32, i32
  }
  func.func @transform_4(%arg0: i32) -> (i32, i32) {
    %c0_i32 = arith.constant 0 : i32
    %c0_i32_0 = arith.constant 0 : i32
    %c0_i32_1 = arith.constant 0 : i32
    return %c0_i32, %c0_i32_0 : i32, i32
  }
  func.func @transform_5(%arg0: i32) -> (i32, i32, i32) {
    %c0_i32 = arith.constant 0 : i32
    %c0_i32_0 = arith.constant 0 : i32
    %c0_i32_1 = arith.constant 0 : i32
    return %arg0, %c0_i32, %c0_i32_0 : i32, i32, i32
  }
}

</mosaic_0001>

<llo_original>
// kernel: rnn_forward.1
$region0: #{rnn_forward.1}
  #allocation0 [shape = 'u32[]', space=smem, size = 0x4, offset = 0x4, fixed_abs, tag = 'smem constant byte address 0x4 - core index']
  #allocation1 [shape = 'u32[144,128]{1,0:T(1,128)}', space=vmem, size = 0x12000, scoped, tag = 'internal scratch']
  #allocation2 [shape = 'f32[8,20]{1,0:T(8,128)}', space=vmem, size = 0x1000, scoped, tag = 'scratch operand']
  %s0 = inlined_call_operand.vmem [shape: f32[1,8,10], index: 0, kind: input, shape index: {}]
  %s1 = inlined_call_operand.vmem [shape: f32[8,20], index: 1, kind: input, shape index: {}]
  %s2 = inlined_call_operand.hbm [shape: f32[10,25], index: 2, kind: input, shape index: {}]
  %s3 = inlined_call_operand.vmem [shape: f32[20,25], index: 3, kind: input, shape index: {}]
  %s4 = inlined_call_operand.vmem [shape: f32[1,25], index: 4, kind: input, shape index: {}]
  %s5 = inlined_call_operand.vmem [shape: f32[1,8,25], index: 5, kind: output, shape index: {}]
  %s6 = sld [smem:[#allocation0]]
  $region38: #{rnn_forward.1} parent=0
    _
  %s8 = ssub.s32 1, %s6
  %s9 = scalar_select 0, %s8, %s6
  $region1: #{rnn_forward.1} parent=0
    #allocation3 [shape = 'u8[8192]{0}', space=vmem, size = 0x2000, scoped, tag = 'input window, operand 2, single buffered']
    #allocation4 [shape = 's32[1]{0}', space=sflag, size = 0x4, scoped, tag = 'scoped memory for rnn_forward.1']
    %10 = vsyncpa [#allocation4], 0
    // Predicated region
    $region2: #{rnn_forward.1} parent=1 // pred_check
      _
    $region3: #{rnn_forward.1} parent=1 // pred_check_branch
      %12 = sbr.rel (0) target = $region5
    $region4: #{rnn_forward.1} parent=1 // pred_region
      _
    $region5: #{rnn_forward.1} parent=1 // pred_fallthru
      _
    // Predicated region
    $region6: #{rnn_forward.1} parent=1 // pred_check
      _
    $region7: #{rnn_forward.1} parent=1 // pred_check_branch
      %14 = sbr.rel (0) target = $region9
    $region8: #{rnn_forward.1} parent=1 // pred_region
      _
    $region9: #{rnn_forward.1} parent=1 // pred_fallthru
      _
    // Predicated region
    $region10: #{rnn_forward.1} parent=1 // pred_check
      _
    $region11: #{rnn_forward.1} parent=1 // pred_check_branch
      %16 = sbr.rel (0) target = $region13
    $region12: #{rnn_forward.1} parent=1 // pred_region
      %s18 = ssub.s32 256, 256
      %19 = vsyncadd [#allocation4], %s18
      %s20 = sshll.u32 [#allocation3], 4
      %s21 = int_to_ptr.vmem [resolvable:$true] %s20
      %26 = dma.hbm_to_vmem [thread:$0]  %s2, 256, %s21, [#allocation4], 128, 128, 8
    $region13: #{rnn_forward.1} parent=1 // pred_fallthru
      _
    // Predicated region
    $region14: #{rnn_forward.1} parent=1 // pred_check
      _
    $region15: #{rnn_forward.1} parent=1 // pred_check_branch
      %28 = sbr.rel (0) target = $region17
    $region16: #{rnn_forward.1} parent=1 // pred_region
      _
    $region17: #{rnn_forward.1} parent=1 // pred_fallthru
      _
    // Predicated region
    $region18: #{rnn_forward.1} parent=1 // pred_check
      _
    $region19: #{rnn_forward.1} parent=1 // pred_check_branch
      %30 = sbr.rel (0) target = $region21
    $region20: #{rnn_forward.1} parent=1 // pred_region
      _
    $region21: #{rnn_forward.1} parent=1 // pred_fallthru
      _
    // Predicated region
    $region22: #{rnn_forward.1} parent=1 // pred_check
      _
    $region23: #{rnn_forward.1} parent=1 // pred_check_branch
      %32 = sbr.rel (0) target = $region25
    $region24: #{rnn_forward.1} parent=1 // pred_region
      %33 = dma.done [#allocation4], 256
    $region25: #{rnn_forward.1} parent=1 // pred_fallthru
      _
    %p34 = scmp.eq.s32.totalorder 0, 0
    // Predicated region
    $region26: #{rnn_forward.1} parent=1 // pred_check
      %p35 = pneg %p34
    $region27: #{rnn_forward.1} parent=1 // pred_check_branch
      %37 = sbr.rel (%p35) target = $region29
    $region28: #{rnn_forward.1} parent=1 // pred_region
      %v38 = vld [vmem:[%s1] sm:$0xff]
      %vm39 = vcmask 162816
      %40 = vst.msk [vmem:[#allocation2] sm:$0xff] %vm39, %v38
    $region29: #{rnn_forward.1} parent=1 // pred_fallthru
      _
    %v41 = vld [vmem:[#allocation3] sm:$0xff]
    %v42 = vld [vmem:[#allocation3 + $0x8] sm:$0x3]
    %v43 = vld [vmem:[%s3] sm:$0xff]
    %v44 = vld [vmem:[%s3 + $0x8] sm:$0xff]
    %v45 = vld [vmem:[%s3 + $0x10] sm:$0xf]
    %v46 = vld [vmem:[%s4] sm:$0x1]
    %v48 = vlaneseq
    %v49 = vshrl.u32 %v48, 7
    %v50 = vsub.s32 0, %v49
    %v51 = vrot.slane %v46, %v50
    %v53 = vlaneseq
    %v54 = vand.u32 %v53, 127
    %vm55 = vcmp.ge.s32.totalorder %v54, 20
    %v56 = vld [vmem:[#allocation2] sm:$0xff]
    %v57 = vld [vmem:[%s0] sm:$0xff]
    %vm58 = vcmask 162816
    %v60 = vsel %vm58, %v56, 0
    %vm62 = vcmask 1043456
    %v64 = vsel %vm62, %v45, 0
    %66 = vmatprep.subr.mxu0 0.0
    %67 = vmatpush1.msra.mxu0 0.0
    %68 = vmatprep.subr.mxu0 0.0
    %69 = vmatpush1.msra.mxu0 0.0
    %70 = vmatprep.subr.mxu0 0.0
    %71 = vmatpush1.msra.mxu0 0.0
    %72 = vmatprep.subr.mxu0 0.0
    %73 = vmatpush1.msra.mxu0 0.0
    %74 = vmatprep.subr.mxu0 0.0
    %75 = vmatpush1.msra.mxu0 0.0
    %76 = vmatprep.subr.mxu0 0.0
    %77 = vmatpush1.msra.mxu0 0.0
    %78 = vmatprep.subr.mxu0 0.0
    %79 = vmatpush1.msra.mxu0 0.0
    %80 = vmatprep.subr.mxu0 0.0
    %81 = vmatpush1.msra.mxu0 0.0
    %82 = vmatprep.subr.mxu0 0.0
    %83 = vmatpush1.msra.mxu0 0.0
    %84 = vmatprep.subr.mxu0 0.0
    %85 = vmatpush1.msra.mxu0 0.0
    %86 = vmatprep.subr.mxu0 0.0
    %87 = vmatpush1.msra.mxu0 0.0
    %88 = vmatprep.subr.mxu0 0.0
    %89 = vmatpush1.msra.mxu0 0.0
    %90 = vmatprep.subr.mxu0 0.0
    %91 = vmatpush1.msra.mxu0 0.0
    %92 = vmatprep.subr.mxu0 0.0
    %93 = vmatpush1.msra.mxu0 %v64
    %94 = vmatprep.subr.mxu0 0.0
    %95 = vmatpush1.msra.mxu0 %v44
    %96 = vmatprep.subr.mxu0 0.0
    %97 = vmatpush1.msra.mxu0 %v43
    %98 = vmatprep.subr.mxu0 0.0
    %99 = vmatpush2.msra.mxu0 0.0
    %100 = vmatprep.subr.mxu0 0.0
    %101 = vmatpush2.msra.mxu0 0.0
    %102 = vmatprep.subr.mxu0 0.0
    %103 = vmatpush2.msra.mxu0 0.0
    %104 = vmatprep.subr.mxu0 0.0
    %105 = vmatpush2.msra.mxu0 0.0
    %106 = vmatprep.subr.mxu0 0.0
    %107 = vmatpush2.msra.mxu0 0.0
    %108 = vmatprep.subr.mxu0 0.0
    %109 = vmatpush2.msra.mxu0 0.0
    %110 = vmatprep.subr.mxu0 0.0
    %111 = vmatpush2.msra.mxu0 0.0
    %112 = vmatprep.subr.mxu0 0.0
    %113 = vmatpush2.msra.mxu0 0.0
    %114 = vmatprep.subr.mxu0 0.0
    %115 = vmatpush2.msra.mxu0 0.0
    %116 = vmatprep.subr.mxu0 0.0
    %117 = vmatpush2.msra.mxu0 0.0
    %118 = vmatprep.subr.mxu0 0.0
    %119 = vmatpush2.msra.mxu0 0.0
    %120 = vmatprep.subr.mxu0 0.0
    %121 = vmatpush2.msra.mxu0 0.0
    %122 = vmatprep.subr.mxu0 0.0
    %123 = vmatpush2.msra.mxu0 0.0
    %124 = vmatprep.subr.mxu0 0.0
    %125 = vmatpush2.msra.mxu0 0.0
    %126 = vmatprep.subr.mxu0 0.0
    %127 = vmatpush2.msra.mxu0 0.0
    %128 = vmatprep.subr.mxu0 0.0
    %129 = vmatpush2.msra.mxu0 0.0
    %130 = vmatprep.mubr.f32.mxu0 0.0
    %131 = vmatmul.mubr.f32.gmra.mxu0 %v60
    %v132 = vpop.f32.mrf.mxu0
    %v133 = vadd.f32 0.0, %v132
    %v134 = vpop.f32.mrf.mxu0
    %135 = vdwg.mxu0
    %vm136 = vcmask 80896
    %v138 = vsel %vm136, %v57, 0
    %vm140 = vcmask 1041408
    %v142 = vsel %vm140, %v42, 0
    %144 = vmatprep.subr.mxu0 0.0
    %145 = vmatpush1.msra.mxu0 0.0
    %146 = vmatprep.subr.mxu0 0.0
    %147 = vmatpush1.msra.mxu0 0.0
    %148 = vmatprep.subr.mxu0 0.0
    %149 = vmatpush1.msra.mxu0 0.0
    %150 = vmatprep.subr.mxu0 0.0
    %151 = vmatpush1.msra.mxu0 0.0
    %152 = vmatprep.subr.mxu0 0.0
    %153 = vmatpush1.msra.mxu0 0.0
    %154 = vmatprep.subr.mxu0 0.0
    %155 = vmatpush1.msra.mxu0 0.0
    %156 = vmatprep.subr.mxu0 0.0
    %157 = vmatpush1.msra.mxu0 0.0
    %158 = vmatprep.subr.mxu0 0.0
    %159 = vmatpush1.msra.mxu0 0.0
    %160 = vmatprep.subr.mxu0 0.0
    %161 = vmatpush1.msra.mxu0 0.0
    %162 = vmatprep.subr.mxu0 0.0
    %163 = vmatpush1.msra.mxu0 0.0
    %164 = vmatprep.subr.mxu0 0.0
    %165 = vmatpush1.msra.mxu0 0.0
    %166 = vmatprep.subr.mxu0 0.0
    %167 = vmatpush1.msra.mxu0 0.0
    %168 = vmatprep.subr.mxu0 0.0
    %169 = vmatpush1.msra.mxu0 0.0
    %170 = vmatprep.subr.mxu0 0.0
    %171 = vmatpush1.msra.mxu0 0.0
    %172 = vmatprep.subr.mxu0 0.0
    %173 = vmatpush1.msra.mxu0 %v142
    %174 = vmatprep.subr.mxu0 0.0
    %175 = vmatpush1.msra.mxu0 %v41
    %176 = vmatprep.subr.mxu0 0.0
    %177 = vmatpush2.msra.mxu0 0.0
    %178 = vmatprep.subr.mxu0 0.0
    %179 = vmatpush2.msra.mxu0 0.0
    %180 = vmatprep.subr.mxu0 0.0
    %181 = vmatpush2.msra.mxu0 0.0
    %182 = vmatprep.subr.mxu0 0.0
    %183 = vmatpush2.msra.mxu0 0.0
    %184 = vmatprep.subr.mxu0 0.0
    %185 = vmatpush2.msra.mxu0 0.0
    %186 = vmatprep.subr.mxu0 0.0
    %187 = vmatpush2.msra.mxu0 0.0
    %188 = vmatprep.subr.mxu0 0.0
    %189 = vmatpush2.msra.mxu0 0.0
    %190 = vmatprep.subr.mxu0 0.0
    %191 = vmatpush2.msra.mxu0 0.0
    %192 = vmatprep.subr.mxu0 0.0
    %193 = vmatpush2.msra.mxu0 0.0
    %194 = vmatprep.subr.mxu0 0.0
    %195 = vmatpush2.msra.mxu0 0.0
    %196 = vmatprep.subr.mxu0 0.0
    %197 = vmatpush2.msra.mxu0 0.0
    %198 = vmatprep.subr.mxu0 0.0
    %199 = vmatpush2.msra.mxu0 0.0
    %200 = vmatprep.subr.mxu0 0.0
    %201 = vmatpush2.msra.mxu0 0.0
    %202 = vmatprep.subr.mxu0 0.0
    %203 = vmatpush2.msra.mxu0 0.0
    %204 = vmatprep.subr.mxu0 0.0
    %205 = vmatpush2.msra.mxu0 0.0
    %206 = vmatprep.subr.mxu0 0.0
    %207 = vmatpush2.msra.mxu0 0.0
    %208 = vmatprep.mubr.f32.mxu0 0.0
    %209 = vmatmul.mubr.f32.gmra.mxu0 %v138
    %v210 = vpop.f32.mrf.mxu0
    %v211 = vadd.f32 %v133, %v210
    %v212 = vpop.f32.mrf.mxu0
    %213 = vdwg.mxu0
    %v214 = vadd.f32 %v211, %v51
    %v215 = vsel %vm55, %v214, -1e+30
    %vm216 = vcmask 203776
    %v217 = vsel %vm216, %v215, -inf
    %218 = vmax.xlane.f32.xlu0 %v217
    %v219 = vpop.xlane.xlu0 %218
    %v220 = vsub.f32 %v215, %v219
    %v221 = vmul.f32 %v220, 1.442695
    %v222 = vpow.pop %v221
    %v223 = vsel %vm216, %v222, 0.0
    %224 = vadd.xlane.f32.xlu0 %v223
    %v225 = vpop.xlane.xlu0 %224
    %v226 = vlog2.pop %v225
    %v227 = vmul.f32 %v226, 0.6931472
    %v228 = vsub.f32 %v220, %v227
    %v229 = vsel %vm55, %v228, %v214
    %230 = vst.msk [vmem:[%s5] sm:$0xff] %vm216, %v229
    %231 = vst.msk [vmem:[#allocation2] sm:$0xff] %vm58, %v214
    // Predicated region
    $region30: #{rnn_forward.1} parent=1 // pred_check
      _
    $region31: #{rnn_forward.1} parent=1 // pred_check_branch
      %233 = sbr.rel (0) target = $region33
    $region32: #{rnn_forward.1} parent=1 // pred_region
      _
    $region33: #{rnn_forward.1} parent=1 // pred_fallthru
      _
    // Predicated region
    $region34: #{rnn_forward.1} parent=1 // pred_check
      _
    $region35: #{rnn_forward.1} parent=1 // pred_check_branch
      %235 = sbr.rel (0) target = $region37
    $region36: #{rnn_forward.1} parent=1 // pred_region
      _
    $region37: #{rnn_forward.1} parent=1 // pred_fallthru
      _
    %236 = vsyncpa [#allocation4], 1

</llo_original>
